<compile_context>
chip_gen: v6e
topology: v6e:2x2x1
jax: 0.10.0
libtpu: 0.0.40
codegen_flags: <defaults>
</compile_context>

<pallas_src>
import functools

import jax
import jax.numpy as jnp
from jax.experimental import pallas as pl
from jax.experimental.pallas import tpu as pltpu


def _round_up(x, m):
    return (x + m - 1) // m * m


def _vmem_capacity_bytes():
    """Physical VMEM per core, with a conservative (v7x) fallback."""
    try:
        cap = int(pltpu.get_tpu_info().vmem_capacity_bytes)
        if cap > 0:
            return cap
    except Exception:
        pass
    return 64 * 1024 * 1024


def _choose_tm(M, vmem_cap_bytes):
    """Pick the M-tile: minimize padding waste, keep >=2 grid steps, fit VMEM."""
    tm_cap = 2048 if vmem_cap_bytes >= 100 * 1024 * 1024 else 1024
    # Ensure at least two grid steps whenever M > 256 so both v7x TensorCores
    # get work (neutral on single-TC v5e/v6e).
    tm_cap = min(tm_cap, max(256, _round_up(pl.cdiv(M, 2), 256)))
    candidates = [c for c in (256, 512, 768, 1024, 2048) if c <= tm_cap]
    # Minimize padded-out rows (wasted MXU flops + output DMA); prefer the larger
    # tile on ties (fewer grid steps -> less per-step overhead, longer DMA bursts).
    return min(candidates, key=lambda c: (_round_up(M, c) - M, -c))


def _patch_embed_kernel(x_ref, w_ref, b_ref, o_ref):
    # x_ref: (TM, Kp) bf16 tile of flattened patch pixels
    # w_ref: (Kp, Dp) bf16 flattened conv weight (resident across the grid)
    # b_ref: (1, Dp)  f32 bias row (resident)
    # o_ref: (TM, Dp) output tile (bf16 by default)
    acc = jnp.dot(x_ref[...], w_ref[...], preferred_element_type=jnp.float32)
    o_ref[...] = (acc + b_ref[...]).astype(o_ref.dtype)


@functools.partial(jax.jit, static_argnames=("patch_size", "tm", "out_dtype"))
def patch_embedding(x, weight, bias, *, patch_size, tm=None, out_dtype=jnp.bfloat16):
    """x: (B, C, H, W); weight: (D, C, p, p); bias: (D,). Returns (B, N, D)."""
    B, C, H, W = x.shape
    D = weight.shape[0]
    p = patch_size
    gh, gw = H // p, W // p
    N = gh * gw
    K = C * p * p
    M = B * N

    # --- glue: patchify (pure layout plumbing; candidate for input fusion) ---
    # (B, C, gh, p, gw, p) -> (B, gh, gw, C, p, p) -> (B*N, C*p*p)
    xp = x.reshape(B, C, gh, p, gw, p)
    xp = jnp.transpose(xp, (0, 2, 4, 1, 3, 5)).reshape(M, K)
    # conv weight (D, C, p, p) -> (C*p*p, D), matching the patch flattening order
    w_flat = jnp.transpose(weight.reshape(D, K), (1, 0))

    # --- pad to lane/MXU-friendly multiples; zero padding is exact for the dot ---
    Kp = _round_up(K, 128)
    Dp = _round_up(D, 128)

    vmem_cap = _vmem_capacity_bytes()
    if tm is None:
        tm = _choose_tm(M, vmem_cap)
    Mp = _round_up(M, tm)
    grid_m = Mp // tm

    xp = jnp.pad(xp, ((0, Mp - M), (0, Kp - K))).astype(jnp.bfloat16)
    w_flat = jnp.pad(w_flat, ((0, Kp - K), (0, Dp - D))).astype(jnp.bfloat16)
    b_row = jnp.pad(bias.astype(jnp.float32), (0, Dp - D)).reshape(1, Dp)

    out_itemsize = jnp.dtype(out_dtype).itemsize
    # double-buffered x / out tiles + (double-buffered) resident weight + bias
    vmem_need = (2 * tm * Kp * 2 + 2 * tm * Dp * out_itemsize
                 + 2 * Kp * Dp * 2 + 2 * Dp * 4)
    vmem_ceiling = max(vmem_cap - 8 * 1024 * 1024, 32 * 1024 * 1024)
    vmem_limit = min(max(32 * 1024 * 1024, int(1.3 * vmem_need) + (2 << 20)),
                     vmem_ceiling)

    cost = pl.CostEstimate(
        flops=2 * M * K * D,
        transcendentals=0,
        bytes_accessed=(M * K * 2 + K * D * 2 + D * 4 + M * D * out_itemsize),
    )

    out = pl.pallas_call(
        _patch_embed_kernel,
        out_shape=jax.ShapeDtypeStruct((Mp, Dp), out_dtype),
        grid_spec=pltpu.PrefetchScalarGridSpec(
            num_scalar_prefetch=0,
            grid=(grid_m,),
            in_specs=[
                pl.BlockSpec((tm, Kp), lambda i: (i, 0)),   # patch tiles, pipelined
                pl.BlockSpec((Kp, Dp), lambda i: (0, 0)),   # weight resident
                pl.BlockSpec((1, Dp), lambda i: (0, 0)),    # bias resident
            ],
            out_specs=pl.BlockSpec((tm, Dp), lambda i: (i, 0)),
        ),
        compiler_params=pltpu.CompilerParams(
            dimension_semantics=("parallel",),       # shards over v7x's 2 TCs
            vmem_limit_bytes=vmem_limit,
            # Let XLA fold the patchify transpose/pad/convert producers into the
            # kernel's input pipeline instead of materializing xp/w_flat in HBM.
            allow_input_fusion=[True, True, True],
        ),
        cost_estimate=cost,
    )(xp, w_flat, b_row)

    return out[:M, :D].reshape(B, N, D)


def _reference(x, weight, bias, patch_size):
    # Pure-JAX reference via lax conv (NCHW, OIHW), then `b d h w -> b (h w) d`.
    y = jax.lax.conv_general_dilated(
        x, weight, window_strides=(patch_size, patch_size), padding="VALID",
        dimension_numbers=("NCHW", "OIHW", "NCHW"))
    y = y + bias[None, :, None, None]
    B, D, gh, gw = y.shape
    return jnp.transpose(y.reshape(B, D, gh * gw), (0, 2, 1))


if __name__ == "__main__":
    # Small, module-consistent shapes.
    B, C, IMG, P, D = 2, 4, 16, 4, 32
    key = jax.random.PRNGKey(0)
    kx, kw, kb = jax.random.split(key, 3)

    x = jax.random.normal(kx, (B, C, IMG, IMG), dtype=jnp.float32)
    fan_in = C * P * P
    weight = jax.random.normal(kw, (D, C, P, P), dtype=jnp.float32) / jnp.sqrt(fan_in)
    bias = jax.random.normal(kb, (D,), dtype=jnp.float32) * 0.01

    N = (IMG // P) ** 2

    # Reference with the same bf16 input rounding (isolates kernel-path error).
    x_b = x.astype(jnp.bfloat16).astype(jnp.float32)
    w_b = weight.astype(jnp.bfloat16).astype(jnp.float32)
    ref_b = _reference(x_b, w_b, bias, P)
    ref = _reference(x, weight, bias, P)

    # Default (bf16 output) path.
    out = patch_embedding(x, weight, bias, patch_size=P)
    out = jax.block_until_ready(out)
    assert out.shape == (B, N, D), out.shape
    assert out.dtype == jnp.bfloat16, out.dtype
    out_f32 = out.astype(jnp.float32)
    assert jnp.allclose(out_f32, ref_b, atol=3e-2, rtol=3e-2), \
        float(jnp.abs(out_f32 - ref_b).max())
    # Loose sanity check against the full-f32 reference (bf16 quantization error).
    assert jnp.allclose(out_f32, ref, atol=1e-1, rtol=1e-1), \
        float(jnp.abs(out_f32 - ref).max())

    # f32-output path (tight check; same bf16 MXU inputs, f32 accumulate + store).
    out32 = patch_embedding(x, weight, bias, patch_size=P, out_dtype=jnp.float32)
    out32 = jax.block_until_ready(out32)
    assert out32.dtype == jnp.float32
    assert jnp.allclose(out32, ref_b, atol=1e-3, rtol=1e-3), \
        float(jnp.abs(out32 - ref_b).max())

    print("KERNEL_OK")
</pallas_src>

<mosaic_0001>
module attributes {stable_mosaic.version = 11 : i64} {
  func.func @_patch_embed_kernel(%arg0: i32, %arg1: memref<256x128xbf16, #tpu.memory_space<vmem>>, %arg2: memref<128x128xbf16, #tpu.memory_space<vmem>>, %arg3: memref<1x128xf32, #tpu.memory_space<vmem>>, %arg4: memref<256x128xbf16, #tpu.memory_space<vmem>>) attributes {dimension_semantics = [#tpu.dimension_semantics<parallel>], iteration_bounds = array<i64: 1>, scalar_prefetch = 0 : i64, scratch_operands = 0 : i64, tpu.core_type = #tpu.core_type<tc>, window_params = [{transform_indices = @transform_0, window_bounds = array<i64: 256, 128>}, {pipeline_mode = #tpu.pipeline_mode<synchronous>, transform_indices = @transform_1, window_bounds = array<i64: 128, 128>}, {pipeline_mode = #tpu.pipeline_mode<synchronous>, transform_indices = @transform_2, window_bounds = array<i64: 1, 128>}, {transform_indices = @transform_3, window_bounds = array<i64: 256, 128>}]} {
    %c0 = arith.constant 0 : index
    %c0_0 = arith.constant 0 : index
    %0 = vector.load %arg1[%c0, %c0_0] : memref<256x128xbf16, #tpu.memory_space<vmem>>, vector<256x128xbf16>
    %c0_1 = arith.constant 0 : index
    %c0_2 = arith.constant 0 : index
    %1 = vector.load %arg2[%c0_1, %c0_2] : memref<128x128xbf16, #tpu.memory_space<vmem>>, vector<128x128xbf16>
    %cst = arith.constant dense<0.000000e+00> : vector<256x128xf32>
    %2 = tpu.matmul %0, %1, %cst {dimension_numbers = #tpu.dot_dimension_numbers<[1], [0], [0], [1], [0, 0, 1, 1], [], []>} : vector<256x128xbf16>, vector<128x128xbf16>, vector<256x128xf32> -> vector<256x128xf32>
    %c0_3 = arith.constant 0 : index
    %c0_4 = arith.constant 0 : index
    %3 = vector.load %arg3[%c0_3, %c0_4] : memref<1x128xf32, #tpu.memory_space<vmem>>, vector<1x128xf32>
    %4 = vector.broadcast %3 : vector<1x128xf32> to vector<256x128xf32>
    %5 = arith.addf %2, %4 : vector<256x128xf32>
    %6 = arith.truncf %5 : vector<256x128xf32> to vector<256x128xbf16>
    %c0_5 = arith.constant 0 : index
    %c0_6 = arith.constant 0 : index
    %7 = vector.load %arg4[%c0_5, %c0_6] : memref<256x128xbf16, #tpu.memory_space<vmem>>, vector<256x128xbf16>
    tpu.vector_store %arg4[%c0_5, %c0_6], %6 {strides = array<i32>} : memref<256x128xbf16, #tpu.memory_space<vmem>>, vector<256x128xbf16>,
    return
  }
  func.func @transform_0(%arg0: i32) -> (i32, i32) {
    %c0_i32 = arith.constant 0 : i32
    %c0_i32_0 = arith.constant 0 : i32
    return %arg0, %c0_i32 : i32, i32
  }
  func.func @transform_1(%arg0: i32) -> (i32, i32) {
    %c0_i32 = arith.constant 0 : i32
    %c0_i32_0 = arith.constant 0 : i32
    %c0_i32_1 = arith.constant 0 : i32
    return %c0_i32, %c0_i32_0 : i32, i32
  }
  func.func @transform_2(%arg0: i32) -> (i32, i32) {
    %c0_i32 = arith.constant 0 : i32
    %c0_i32_0 = arith.constant 0 : i32
    %c0_i32_1 = arith.constant 0 : i32
    return %c0_i32, %c0_i32_0 : i32, i32
  }
  func.func @transform_3(%arg0: i32) -> (i32, i32) {
    %c0_i32 = arith.constant 0 : i32
    %c0_i32_0 = arith.constant 0 : i32
    return %arg0, %c0_i32 : i32, i32
  }
}

</mosaic_0001>

<llo_original>
// kernel: patch_embedding.2
$region0: #{patch_embedding.2}
  #allocation0 [shape = 'u32[]', space=smem, size = 0x4, offset = 0x4, fixed_abs, tag = 'smem constant byte address 0x4 - core index']
  #allocation1 [shape = 'u32[144,128]{1,0:T(1,128)}', space=vmem, size = 0x12000, scoped, tag = 'internal scratch']
  #allocation2 [shape = 'u32[2048]{0}', space=vmem, size = 0x2000, scoped, tag = 'scoped memory for patch_embedding.2']
  #allocation3 [shape = 'u32[2048]{0}', space=vmem, size = 0x2000, scoped, tag = 'scoped memory for patch_embedding.2']
  #allocation4 [shape = 'u32[2048]{0}', space=vmem, size = 0x2000, scoped, tag = 'scoped memory for patch_embedding.2']
  #allocation5 [shape = 'u32[2048]{0}', space=vmem, size = 0x2000, scoped, tag = 'scoped memory for patch_embedding.2']
  #allocation6 [shape = 'u32[2048]{0}', space=vmem, size = 0x2000, scoped, tag = 'scoped memory for patch_embedding.2']
  #allocation7 [shape = 'u32[2048]{0}', space=vmem, size = 0x2000, scoped, tag = 'scoped memory for patch_embedding.2']
  #allocation8 [shape = 'u32[2048]{0}', space=vmem, size = 0x2000, scoped, tag = 'scoped memory for patch_embedding.2']
  #allocation9 [shape = 'u32[2048]{0}', space=vmem, size = 0x2000, scoped, tag = 'scoped memory for patch_embedding.2']
  #allocation10 [shape = 'u32[2048]{0}', space=vmem, size = 0x2000, scoped, tag = 'scoped memory for patch_embedding.2']
  #allocation11 [shape = 'u32[2048]{0}', space=vmem, size = 0x2000, scoped, tag = 'scoped memory for patch_embedding.2']
  #allocation12 [shape = 'u32[2048]{0}', space=vmem, size = 0x2000, scoped, tag = 'scoped memory for patch_embedding.2']
  #allocation13 [shape = 'u32[2048]{0}', space=vmem, size = 0x2000, scoped, tag = 'scoped memory for patch_embedding.2']
  #allocation14 [shape = 'u32[2048]{0}', space=vmem, size = 0x2000, scoped, tag = 'scoped memory for patch_embedding.2']
  #allocation15 [shape = 'u32[2048]{0}', space=vmem, size = 0x2000, scoped, tag = 'scoped memory for patch_embedding.2']
  #allocation16 [shape = 'u32[2048]{0}', space=vmem, size = 0x2000, scoped, tag = 'scoped memory for patch_embedding.2']
  %s0 = inlined_call_operand.vmem [shape: bf16[32,64], index: 0, kind: input, shape index: {}]
  %s1 = inlined_call_operand.<no memory space> [shape: bf16[], index: 1, kind: input, shape index: {}]
  %s2 = inlined_call_operand.vmem [shape: bf16[64,32], index: 2, kind: input, shape index: {}]
  %s3 = inlined_call_operand.vmem [shape: f32[32], index: 3, kind: input, shape index: {}]
  %s4 = inlined_call_operand.<no memory space> [shape: f32[], index: 4, kind: input, shape index: {}]
  %s5 = inlined_call_operand.vmem [shape: bf16[256,128], index: 5, kind: output, shape index: {}]
  %s6 = sld [smem:[#allocation0]]
  $region22: #{patch_embedding.2} parent=0
    _
  %s8 = ssub.s32 1, %s6
  %s9 = scalar_select 0, %s8, %s6
  %v10 = vstv %s1
  %v11 = vunpack.i.l.bf16 %v10
  %v13 = vunpack.i.h.bf16 %v10
  %v15 = vstv %s1
  %v16 = vunpack.i.l.bf16 %v15
  %v18 = vunpack.i.h.bf16 %v15
  %v20 = vstv %s4
  $region1: #{patch_embedding.2} parent=0
    #allocation17 [shape = 'u8[65536]{0}', space=vmem, size = 0x10000, dematerialized = true, scoped, tag = 'FusionAdapter Buffer %fusion.1 = bf16[256,128]{1,0:T(8,128)(2,1)} fusion(%param_0.7, %param_1.5), kind=kLoop, calls=%fused_computation.2.clone, metadata={op_name="jit(patch_embedding)/jit(_pad)/pad" stack_frame_id=11}']
    #allocation18 [shape = 'u8[32768]{0}', space=vmem, size = 0x8000, dematerialized = true, scoped, tag = 'FusionAdapter Buffer %fusion.2 = bf16[128,128]{1,0:T(8,128)(2,1)} fusion(%param_2.3, %param_1.5), kind=kLoop, calls=%fused_computation.3.clone, metadata={op_name="jit(patch_embedding)/jit(_pad)/pad" stack_frame_id=13}']
    #allocation19 [shape = 'u8[512]{0}', space=vmem, size = 0x400, dematerialized = true, scoped, tag = 'FusionAdapter Buffer %fusion.3 = f32[1,128]{1,0:T(1,128)} fusion(%param_3.3, %param_4), kind=kLoop, calls=%fused_computation.4.clone, metadata={op_name="jit(patch_embedding)/reshape" stack_frame_id=16}']
    // Predicated region
    $region2: #{patch_embedding.2} parent=1 // pred_check
      _
    $region3: #{patch_embedding.2} parent=1 // pred_check_branch
      %22 = sbr.rel (0) target = $region5
    $region4: #{patch_embedding.2} parent=1 // pred_region
      _
    $region5: #{patch_embedding.2} parent=1 // pred_fallthru
      _
    // Predicated region
    $region6: #{patch_embedding.2} parent=1 // pred_check
      _
    $region7: #{patch_embedding.2} parent=1 // pred_check_branch
      %24 = sbr.rel (0) target = $region9
    $region8: #{patch_embedding.2} parent=1 // pred_region
      _
    $region9: #{patch_embedding.2} parent=1 // pred_fallthru
      _
    // Predicated region
    $region10: #{patch_embedding.2} parent=1 // pred_check
      _
    $region11: #{patch_embedding.2} parent=1 // pred_check_branch
      %26 = sbr.rel (0) target = $region13
    $region12: #{patch_embedding.2} parent=1 // pred_region
      _
    $region13: #{patch_embedding.2} parent=1 // pred_fallthru
      _
    %s28 = sor.u32 255, 127
    %s29 = sand.u32 %s28, 85
    %s30 = sshrl.u32 %s29, 1
    %s31 = sor.u32 %s29, %s30
    %s32 = sand.u32 51, %s31
    %s33 = sshrl.u32 %s32, 2
    %s34 = sor.u32 %s32, %s33
    %s35 = sand.u32 15, %s34
    %v36 = vld [vmem:[%s0] sm:%s35]
    %v37 = vunpack.c.l.bf16 %v36
    %v38 = vunpack.c.h.bf16 %v36
    %v39 = vlaneseq
    %v40 = vand.u32 %v39, 127
    %vm42 = vcmp.lt.s32.totalorder %v40, 64
    %v43 = vsel %vm42, %v37, %v11
    %v44 = vpack.c.bf16 0.0, %v43
    %s46 = ssub.s32 16, 1
    %47 = vst [vmem:[#allocation17] sm:%s46] %v44
    %s48 = scalar_lea.vmem %s0, 4
    %s50 = sor.u32 255, 127
    %s51 = sand.u32 %s50, 85
    %s52 = sshrl.u32 %s51, 1
    %s53 = sor.u32 %s51, %s52
    %s54 = sand.u32 51, %s53
    %s55 = sshrl.u32 %s54, 2
    %s56 = sor.u32 %s54, %s55
    %s57 = sand.u32 15, %s56
    %v58 = vld [vmem:[%s48] sm:%s57]
    %v59 = vunpack.c.l.bf16 %v58
    %v60 = vunpack.c.h.bf16 %v58
    %v61 = vlaneseq
    %v62 = vand.u32 %v61, 127
    %vm64 = vcmp.lt.s32.totalorder %v62, 64
    %v65 = vsel %vm64, %v59, %v11
    %s66 = scalar_lea.vmem [#allocation17], 4
    %v67 = vpack.c.bf16 0.0, %v65
    %s69 = ssub.s32 16, 1
    %70 = vst [vmem:[%s66] sm:%s69] %v67
    %s71 = scalar_lea.vmem %s0, 8
    %s73 = sor.u32 255, 127
    %s74 = sand.u32 %s73, 85
    %s75 = sshrl.u32 %s74, 1
    %s76 = sor.u32 %s74, %s75
    %s77 = sand.u32 51, %s76
    %s78 = sshrl.u32 %s77, 2
    %s79 = sor.u32 %s77, %s78
    %s80 = sand.u32 15, %s79
    %v81 = vld [vmem:[%s71] sm:%s80]
    %v82 = vunpack.c.l.bf16 %v81
    %v83 = vunpack.c.h.bf16 %v81
    %v84 = vlaneseq
    %v85 = vand.u32 %v84, 127
    %vm87 = vcmp.lt.s32.totalorder %v85, 64
    %v88 = vsel %vm87, %v82, %v11
    %s89 = scalar_lea.vmem [#allocation17], 8
    %v90 = vpack.c.bf16 0.0, %v88
    %s92 = ssub.s32 16, 1
    %93 = vst [vmem:[%s89] sm:%s92] %v90
    %s94 = scalar_lea.vmem %s0, 12
    %s96 = sor.u32 255, 127
    %s97 = sand.u32 %s96, 85
    %s98 = sshrl.u32 %s97, 1
    %s99 = sor.u32 %s97, %s98
    %s100 = sand.u32 51, %s99
    %s101 = sshrl.u32 %s100, 2
    %s102 = sor.u32 %s100, %s101
    %s103 = sand.u32 15, %s102
    %v104 = vld [vmem:[%s94] sm:%s103]
    %v105 = vunpack.c.l.bf16 %v104
    %v106 = vunpack.c.h.bf16 %v104
    %v107 = vlaneseq
    %v108 = vand.u32 %v107, 127
    %vm110 = vcmp.lt.s32.totalorder %v108, 64
    %v111 = vsel %vm110, %v105, %v11
    %s112 = scalar_lea.vmem [#allocation17], 12
    %v113 = vpack.c.bf16 0.0, %v111
    %s115 = ssub.s32 16, 1
    %116 = vst [vmem:[%s112] sm:%s115] %v113
    %s117 = scalar_lea.vmem [#allocation17], 16
    %v118 = vpack.c.bf16 0.0, %v11
    %s120 = ssub.s32 16, 1
    %121 = vst [vmem:[%s117] sm:%s120] %v118
    %s122 = scalar_lea.vmem [#allocation17], 20
    %v123 = vpack.c.bf16 0.0, %v11
    %s125 = ssub.s32 16, 1
    %126 = vst [vmem:[%s122] sm:%s125] %v123
    %s127 = scalar_lea.vmem [#allocation17], 24
    %v128 = vpack.c.bf16 0.0, %v11
    %s130 = ssub.s32 16, 1
    %131 = vst [vmem:[%s127] sm:%s130] %v128
    %s132 = scalar_lea.vmem [#allocation17], 28
    %v133 = vpack.c.bf16 0.0, %v11
    %s135 = ssub.s32 16, 1
    %136 = vst [vmem:[%s132] sm:%s135] %v133
    %s137 = scalar_lea.vmem [#allocation17], 32
    %v138 = vpack.c.bf16 0.0, %v11
    %s140 = ssub.s32 16, 1
    %141 = vst [vmem:[%s137] sm:%s140] %v138
    %s142 = scalar_lea.vmem [#allocation17], 36
    %v143 = vpack.c.bf16 0.0, %v11
    %s145 = ssub.s32 16, 1
    %146 = vst [vmem:[%s142] sm:%s145] %v143
    %s147 = scalar_lea.vmem [#allocation17], 40
    %v148 = vpack.c.bf16 0.0, %v11
    %s150 = ssub.s32 16, 1
    %151 = vst [vmem:[%s147] sm:%s150] %v148
    %s152 = scalar_lea.vmem [#allocation17], 44
    %v153 = vpack.c.bf16 0.0, %v11
    %s155 = ssub.s32 16, 1
    %156 = vst [vmem:[%s152] sm:%s155] %v153
    %s157 = scalar_lea.vmem [#allocation17], 48
    %v158 = vpack.c.bf16 0.0, %v11
    %s160 = ssub.s32 16, 1
    %161 = vst [vmem:[%s157] sm:%s160] %v158
    %s162 = scalar_lea.vmem [#allocation17], 52
    %v163 = vpack.c.bf16 0.0, %v11
    %s165 = ssub.s32 16, 1
    %166 = vst [vmem:[%s162] sm:%s165] %v163
    %s167 = scalar_lea.vmem [#allocation17], 56
    %v168 = vpack.c.bf16 0.0, %v11
    %s170 = ssub.s32 16, 1
    %171 = vst [vmem:[%s167] sm:%s170] %v168
    %s172 = scalar_lea.vmem [#allocation17], 60
    %v173 = vpack.c.bf16 0.0, %v11
    %s175 = ssub.s32 16, 1
    %176 = vst [vmem:[%s172] sm:%s175] %v173
    %s177 = scalar_lea.vmem [#allocation17], 64
    %v178 = vpack.c.bf16 0.0, %v11
    %s180 = ssub.s32 16, 1
    %181 = vst [vmem:[%s177] sm:%s180] %v178
    %s182 = scalar_lea.vmem [#allocation17], 68
    %v183 = vpack.c.bf16 0.0, %v11
    %s185 = ssub.s32 16, 1
    %186 = vst [vmem:[%s182] sm:%s185] %v183
    %s187 = scalar_lea.vmem [#allocation17], 72
    %v188 = vpack.c.bf16 0.0, %v11
    %s190 = ssub.s32 16, 1
    %191 = vst [vmem:[%s187] sm:%s190] %v188
    %s192 = scalar_lea.vmem [#allocation17], 76
    %v193 = vpack.c.bf16 0.0, %v11
    %s195 = ssub.s32 16, 1
    %196 = vst [vmem:[%s192] sm:%s195] %v193
    %s197 = scalar_lea.vmem [#allocation17], 80
    %v198 = vpack.c.bf16 0.0, %v11
    %s200 = ssub.s32 16, 1
    %201 = vst [vmem:[%s197] sm:%s200] %v198
    %s202 = scalar_lea.vmem [#allocation17], 84
    %v203 = vpack.c.bf16 0.0, %v11
    %s205 = ssub.s32 16, 1
    %206 = vst [vmem:[%s202] sm:%s205] %v203
    %s207 = scalar_lea.vmem [#allocation17], 88
    %v208 = vpack.c.bf16 0.0, %v11
    %s210 = ssub.s32 16, 1
    %211 = vst [vmem:[%s207] sm:%s210] %v208
    %s212 = scalar_lea.vmem [#allocation17], 92
    %v213 = vpack.c.bf16 0.0, %v11
    %s215 = ssub.s32 16, 1
    %216 = vst [vmem:[%s212] sm:%s215] %v213
    %s217 = scalar_lea.vmem [#allocation17], 96
    %v218 = vpack.c.bf16 0.0, %v11
    %s220 = ssub.s32 16, 1
    %221 = vst [vmem:[%s217] sm:%s220] %v218
    %s222 = scalar_lea.vmem [#allocation17], 100
    %v223 = vpack.c.bf16 0.0, %v11
    %s225 = ssub.s32 16, 1
    %226 = vst [vmem:[%s222] sm:%s225] %v223
    %s227 = scalar_lea.vmem [#allocation17], 104
    %v228 = vpack.c.bf16 0.0, %v11
    %s230 = ssub.s32 16, 1
    %231 = vst [vmem:[%s227] sm:%s230] %v228
    %s232 = scalar_lea.vmem [#allocation17], 108
    %v233 = vpack.c.bf16 0.0, %v11
    %s235 = ssub.s32 16, 1
    %236 = vst [vmem:[%s232] sm:%s235] %v233
    %s237 = scalar_lea.vmem [#allocation17], 112
    %v238 = vpack.c.bf16 0.0, %v11
    %s240 = ssub.s32 16, 1
    %241 = vst [vmem:[%s237] sm:%s240] %v238
    %s242 = scalar_lea.vmem [#allocation17], 116
    %v243 = vpack.c.bf16 0.0, %v11
    %s245 = ssub.s32 16, 1
    %246 = vst [vmem:[%s242] sm:%s245] %v243
    %s247 = scalar_lea.vmem [#allocation17], 120
    %v248 = vpack.c.bf16 0.0, %v11
    %s250 = ssub.s32 16, 1
    %251 = vst [vmem:[%s247] sm:%s250] %v248
    %s252 = scalar_lea.vmem [#allocation17], 124
    %v253 = vpack.c.bf16 0.0, %v11
    %s255 = ssub.s32 16, 1
    %256 = vst [vmem:[%s252] sm:%s255] %v253
    %s258 = sor.u32 255, 127
    %s259 = sand.u32 %s258, 85
    %s260 = sshrl.u32 %s259, 1
    %s261 = sor.u32 %s259, %s260
    %s262 = sand.u32 51, %s261
    %s263 = sshrl.u32 %s262, 2
    %s264 = sor.u32 %s262, %s263
    %s265 = sand.u32 15, %s264
    %v266 = vld [vmem:[%s2] sm:%s265]
    %v267 = vunpack.c.l.bf16 %v266
    %v268 = vunpack.c.h.bf16 %v266
    %v269 = vlaneseq
    %v270 = vand.u32 %v269, 127
    %vm272 = vcmp.lt.s32.totalorder %v270, 32
    %v273 = vsel %vm272, %v267, %v16
    %v274 = vpack.c.bf16 0.0, %v273
    %s276 = ssub.s32 16, 1
    %277 = vst [vmem:[#allocation18] sm:%s276] %v274
    %s278 = scalar_lea.vmem %s2, 4
    %s280 = sor.u32 255, 127
    %s281 = sand.u32 %s280, 85
    %s282 = sshrl.u32 %s281, 1
    %s283 = sor.u32 %s281, %s282
    %s284 = sand.u32 51, %s283
    %s285 = sshrl.u32 %s284, 2
    %s286 = sor.u32 %s284, %s285
    %s287 = sand.u32 15, %s286
    %v288 = vld [vmem:[%s278] sm:%s287]
    %v289 = vunpack.c.l.bf16 %v288
    %v290 = vunpack.c.h.bf16 %v288
    %v291 = vlaneseq
    %v292 = vand.u32 %v291, 127
    %vm294 = vcmp.lt.s32.totalorder %v292, 32
    %v295 = vsel %vm294, %v289, %v16
    %s296 = scalar_lea.vmem [#allocation18], 4
    %v297 = vpack.c.bf16 0.0, %v295
    %s299 = ssub.s32 16, 1
    %300 = vst [vmem:[%s296] sm:%s299] %v297
    %s301 = scalar_lea.vmem %s2, 8
    %s303 = sor.u32 255, 127
    %s304 = sand.u32 %s303, 85
    %s305 = sshrl.u32 %s304, 1
    %s306 = sor.u32 %s304, %s305
    %s307 = sand.u32 51, %s306
    %s308 = sshrl.u32 %s307, 2
    %s309 = sor.u32 %s307, %s308
    %s310 = sand.u32 15, %s309
    %v311 = vld [vmem:[%s301] sm:%s310]
    %v312 = vunpack.c.l.bf16 %v311
    %v313 = vunpack.c.h.bf16 %v311
    %v314 = vlaneseq
    %v315 = vand.u32 %v314, 127
    %vm317 = vcmp.lt.s32.totalorder %v315, 32
    %v318 = vsel %vm317, %v312, %v16
    %s319 = scalar_lea.vmem [#allocation18], 8
    %v320 = vpack.c.bf16 0.0, %v318
    %s322 = ssub.s32 16, 1
    %323 = vst [vmem:[%s319] sm:%s322] %v320
    %s324 = scalar_lea.vmem %s2, 12
    %s326 = sor.u32 255, 127
    %s327 = sand.u32 %s326, 85
    %s328 = sshrl.u32 %s327, 1
    %s329 = sor.u32 %s327, %s328
    %s330 = sand.u32 51, %s329
    %s331 = sshrl.u32 %s330, 2
    %s332 = sor.u32 %s330, %s331
    %s333 = sand.u32 15, %s332
    %v334 = vld [vmem:[%s324] sm:%s333]
    %v335 = vunpack.c.l.bf16 %v334
    %v336 = vunpack.c.h.bf16 %v334
    %v337 = vlaneseq
    %v338 = vand.u32 %v337, 127
    %vm340 = vcmp.lt.s32.totalorder %v338, 32
    %v341 = vsel %vm340, %v335, %v16
    %s342 = scalar_lea.vmem [#allocation18], 12
    %v343 = vpack.c.bf16 0.0, %v341
    %s345 = ssub.s32 16, 1
    %346 = vst [vmem:[%s342] sm:%s345] %v343
    %s347 = scalar_lea.vmem %s2, 16
    %s349 = sor.u32 255, 127
    %s350 = sand.u32 %s349, 85
    %s351 = sshrl.u32 %s350, 1
    %s352 = sor.u32 %s350, %s351
    %s353 = sand.u32 51, %s352
    %s354 = sshrl.u32 %s353, 2
    %s355 = sor.u32 %s353, %s354
    %s356 = sand.u32 15, %s355
    %v357 = vld [vmem:[%s347] sm:%s356]
    %v358 = vunpack.c.l.bf16 %v357
    %v359 = vunpack.c.h.bf16 %v357
    %v360 = vlaneseq
    %v361 = vand.u32 %v360, 127
    %vm363 = vcmp.lt.s32.totalorder %v361, 32
    %v364 = vsel %vm363, %v358, %v16
    %s365 = scalar_lea.vmem [#allocation18], 16
    %v366 = vpack.c.bf16 0.0, %v364
    %s368 = ssub.s32 16, 1
    %369 = vst [vmem:[%s365] sm:%s368] %v366
    %s370 = scalar_lea.vmem %s2, 20
    %s372 = sor.u32 255, 127
    %s373 = sand.u32 %s372, 85
    %s374 = sshrl.u32 %s373, 1
    %s375 = sor.u32 %s373, %s374
    %s376 = sand.u32 51, %s375
    %s377 = sshrl.u32 %s376, 2
    %s378 = sor.u32 %s376, %s377
    %s379 = sand.u32 15, %s378
    %v380 = vld [vmem:[%s370] sm:%s379]
    %v381 = vunpack.c.l.bf16 %v380
    %v382 = vunpack.c.h.bf16 %v380
    %v383 = vlaneseq
    %v384 = vand.u32 %v383, 127
    %vm386 = vcmp.lt.s32.totalorder %v384, 32
    %v387 = vsel %vm386, %v381, %v16
    %s388 = scalar_lea.vmem [#allocation18], 20
    %v389 = vpack.c.bf16 0.0, %v387
    %s391 = ssub.s32 16, 1
    %392 = vst [vmem:[%s388] sm:%s391] %v389
    %s393 = scalar_lea.vmem %s2, 24
    %s395 = sor.u32 255, 127
    %s396 = sand.u32 %s395, 85
    %s397 = sshrl.u32 %s396, 1
    %s398 = sor.u32 %s396, %s397
    %s399 = sand.u32 51, %s398
    %s400 = sshrl.u32 %s399, 2
    %s401 = sor.u32 %s399, %s400
    %s402 = sand.u32 15, %s401
    %v403 = vld [vmem:[%s393] sm:%s402]
    %v404 = vunpack.c.l.bf16 %v403
    %v405 = vunpack.c.h.bf16 %v403
    %v406 = vlaneseq
    %v407 = vand.u32 %v406, 127
    %vm409 = vcmp.lt.s32.totalorder %v407, 32
    %v410 = vsel %vm409, %v404, %v16
    %s411 = scalar_lea.vmem [#allocation18], 24
    %v412 = vpack.c.bf16 0.0, %v410
    %s414 = ssub.s32 16, 1
    %415 = vst [vmem:[%s411] sm:%s414] %v412
    %s416 = scalar_lea.vmem %s2, 28
    %s418 = sor.u32 255, 127
    %s419 = sand.u32 %s418, 85
    %s420 = sshrl.u32 %s419, 1
    %s421 = sor.u32 %s419, %s420
    %s422 = sand.u32 51, %s421
    %s423 = sshrl.u32 %s422, 2
    %s424 = sor.u32 %s422, %s423
    %s425 = sand.u32 15, %s424
    %v426 = vld [vmem:[%s416] sm:%s425]
    %v427 = vunpack.c.l.bf16 %v426
    %v428 = vunpack.c.h.bf16 %v426
    %v429 = vlaneseq
    %v430 = vand.u32 %v429, 127
    %vm432 = vcmp.lt.s32.totalorder %v430, 32
    %v433 = vsel %vm432, %v427, %v16
    %s434 = scalar_lea.vmem [#allocation18], 28
    %v435 = vpack.c.bf16 0.0, %v433
    %s437 = ssub.s32 16, 1
    %438 = vst [vmem:[%s434] sm:%s437] %v435
    %s439 = scalar_lea.vmem [#allocation18], 32
    %v440 = vpack.c.bf16 0.0, %v16
    %s442 = ssub.s32 16, 1
    %443 = vst [vmem:[%s439] sm:%s442] %v440
    %s444 = scalar_lea.vmem [#allocation18], 36
    %v445 = vpack.c.bf16 0.0, %v16
    %s447 = ssub.s32 16, 1
    %448 = vst [vmem:[%s444] sm:%s447] %v445
    %s449 = scalar_lea.vmem [#allocation18], 40
    %v450 = vpack.c.bf16 0.0, %v16
    %s452 = ssub.s32 16, 1
    %453 = vst [vmem:[%s449] sm:%s452] %v450
    %s454 = scalar_lea.vmem [#allocation18], 44
    %v455 = vpack.c.bf16 0.0, %v16
    %s457 = ssub.s32 16, 1
    %458 = vst [vmem:[%s454] sm:%s457] %v455
    %s459 = scalar_lea.vmem [#allocation18], 48
    %v460 = vpack.c.bf16 0.0, %v16
    %s462 = ssub.s32 16, 1
    %463 = vst [vmem:[%s459] sm:%s462] %v460
    %s464 = scalar_lea.vmem [#allocation18], 52
    %v465 = vpack.c.bf16 0.0, %v16
    %s467 = ssub.s32 16, 1
    %468 = vst [vmem:[%s464] sm:%s467] %v465
    %s469 = scalar_lea.vmem [#allocation18], 56
    %v470 = vpack.c.bf16 0.0, %v16
    %s472 = ssub.s32 16, 1
    %473 = vst [vmem:[%s469] sm:%s472] %v470
    %s474 = scalar_lea.vmem [#allocation18], 60
    %v475 = vpack.c.bf16 0.0, %v16
    %s477 = ssub.s32 16, 1
    %478 = vst [vmem:[%s474] sm:%s477] %v475
    %v479 = vld [vmem:[%s3] sm:$0x1]
    %v480 = vlaneseq
    %vm482 = vcmp.lt.s32.totalorder %v480, 32
    %v483 = vsel %vm482, %v479, %v20
    %s485 = ssub.s32 2, 1
    %486 = vst [vmem:[#allocation19] sm:%s485] %v483
    %v488 = vld [vmem:[#allocation17] sm:$0xf]
    %v489 = vld [vmem:[#allocation17 + $0x4] sm:$0xf]
    %v490 = vld [vmem:[#allocation17 + $0x8] sm:$0xf]
    %v491 = vld [vmem:[#allocation17 + $0xc] sm:$0xf]
    %v492 = vld [vmem:[#allocation17 + $0x10] sm:$0xf]
    %v493 = vld [vmem:[#allocation17 + $0x14] sm:$0xf]
    %v494 = vld [vmem:[#allocation17 + $0x18] sm:$0xf]
    %v495 = vld [vmem:[#allocation17 + $0x1c] sm:$0xf]
    %v496 = vld [vmem:[#allocation17 + $0x20] sm:$0xf]
    %v497 = vld [vmem:[#allocation17 + $0x24] sm:$0xf]
    %v498 = vld [vmem:[#allocation17 + $0x28] sm:$0xf]
    %v499 = vld [vmem:[#allocation17 + $0x2c] sm:$0xf]
    %v500 = vld [vmem:[#allocation17 + $0x30] sm:$0xf]
    %v501 = vld [vmem:[#allocation17 + $0x34] sm:$0xf]
    %v502 = vld [vmem:[#allocation17 + $0x38] sm:$0xf]
    %v503 = vld [vmem:[#allocation17 + $0x3c] sm:$0xf]
    %v504 = vld [vmem:[#allocation17 + $0x40] sm:$0xf]
    %v505 = vld [vmem:[#allocation17 + $0x44] sm:$0xf]
    %v506 = vld [vmem:[#allocation17 + $0x48] sm:$0xf]
    %v507 = vld [vmem:[#allocation17 + $0x4c] sm:$0xf]
    %v508 = vld [vmem:[#allocation17 + $0x50] sm:$0xf]
    %v509 = vld [vmem:[#allocation17 + $0x54] sm:$0xf]
    %v510 = vld [vmem:[#allocation17 + $0x58] sm:$0xf]
    %v511 = vld [vmem:[#allocation17 + $0x5c] sm:$0xf]
    %v512 = vld [vmem:[#allocation17 + $0x60] sm:$0xf]
    %v513 = vld [vmem:[#allocation17 + $0x64] sm:$0xf]
    %v514 = vld [vmem:[#allocation17 + $0x68] sm:$0xf]
    %v515 = vld [vmem:[#allocation17 + $0x6c] sm:$0xf]
    %v516 = vld [vmem:[#allocation17 + $0x70] sm:$0xf]
    %v517 = vld [vmem:[#allocation17 + $0x74] sm:$0xf]
    %v518 = vld [vmem:[#allocation17 + $0x78] sm:$0xf]
    %v519 = vld [vmem:[#allocation17 + $0x7c] sm:$0xf]
    %v520 = vld [vmem:[#allocation18] sm:$0xf]
    %v521 = vld [vmem:[#allocation18 + $0x4] sm:$0xf]
    %v522 = vld [vmem:[#allocation18 + $0x8] sm:$0xf]
    %v523 = vld [vmem:[#allocation18 + $0xc] sm:$0xf]
    %v524 = vld [vmem:[#allocation18 + $0x10] sm:$0xf]
    %v525 = vld [vmem:[#allocation18 + $0x14] sm:$0xf]
    %v526 = vld [vmem:[#allocation18 + $0x18] sm:$0xf]
    %v527 = vld [vmem:[#allocation18 + $0x1c] sm:$0xf]
    %v528 = vld [vmem:[#allocation18 + $0x20] sm:$0xf]
    %v529 = vld [vmem:[#allocation18 + $0x24] sm:$0xf]
    %v530 = vld [vmem:[#allocation18 + $0x28] sm:$0xf]
    %v531 = vld [vmem:[#allocation18 + $0x2c] sm:$0xf]
    %v532 = vld [vmem:[#allocation18 + $0x30] sm:$0xf]
    %v533 = vld [vmem:[#allocation18 + $0x34] sm:$0xf]
    %v534 = vld [vmem:[#allocation18 + $0x38] sm:$0xf]
    %v535 = vld [vmem:[#allocation18 + $0x3c] sm:$0xf]
    %v536 = vld [vmem:[#allocation19] sm:$0x1]
    %v538 = vlaneseq
    %v539 = vshrl.u32 %v538, 7
    %v540 = vsub.s32 0, %v539
    %v541 = vrot.slane %v536, %v540
    %v575 = vunpack.c.l.b16 %v488
    %v576 = vunpack.c.l.b16 %v489
    %v577 = vunpack.c.l.b16 %v490
    %v578 = vunpack.c.l.b16 %v491
    %v579 = vunpack.c.l.b16 %v492
    %v580 = vunpack.c.l.b16 %v493
    %v581 = vunpack.c.l.b16 %v494
    %v582 = vunpack.c.l.b16 %v495
    %v583 = vunpack.c.l.b16 %v496
    %v584 = vunpack.c.l.b16 %v497
    %v585 = vunpack.c.l.b16 %v498
    %v586 = vunpack.c.l.b16 %v499
    %v587 = vunpack.c.l.b16 %v500
    %v588 = vunpack.c.l.b16 %v501
    %v589 = vunpack.c.l.b16 %v502
    %v590 = vunpack.c.l.b16 %v503
    %v591 = vunpack.c.l.b16 %v504
    %v592 = vunpack.c.l.b16 %v505
    %v593 = vunpack.c.l.b16 %v506
    %v594 = vunpack.c.l.b16 %v507
    %v595 = vunpack.c.l.b16 %v508
    %v596 = vunpack.c.l.b16 %v509
    %v597 = vunpack.c.l.b16 %v510
    %v598 = vunpack.c.l.b16 %v511
    %v599 = vunpack.c.l.b16 %v512
    %v600 = vunpack.c.l.b16 %v513
    %v601 = vunpack.c.l.b16 %v514
    %v602 = vunpack.c.l.b16 %v515
    %v603 = vunpack.c.l.b16 %v516
    %v604 = vunpack.c.l.b16 %v517
    %v605 = vunpack.c.l.b16 %v518
    %v606 = vunpack.c.l.b16 %v519
    %v607 = vpack.c.b16 %v576, %v575
    %v608 = vpack.c.b16 %v578, %v577
    %v609 = vpack.c.b16 %v580, %v579
    %v610 = vpack.c.b16 %v582, %v581
    %v611 = vpack.c.b16 %v584, %v583
    %v612 = vpack.c.b16 %v586, %v585
    %v613 = vpack.c.b16 %v588, %v587
    %v614 = vpack.c.b16 %v590, %v589
    %v615 = vpack.c.b16 %v592, %v591
    %v616 = vpack.c.b16 %v594, %v593
    %v617 = vpack.c.b16 %v596, %v595
    %v618 = vpack.c.b16 %v598, %v597
    %v619 = vpack.c.b16 %v600, %v599
    %v620 = vpack.c.b16 %v602, %v601
    %v621 = vpack.c.b16 %v604, %v603
    %v622 = vpack.c.b16 %v606, %v605
    %v655 = vunpack.c.l.b16 %v520
    %v656 = vunpack.c.l.b16 %v521
    %v657 = vunpack.c.l.b16 %v522
    %v658 = vunpack.c.l.b16 %v523
    %v659 = vunpack.c.l.b16 %v524
    %v660 = vunpack.c.l.b16 %v525
    %v661 = vunpack.c.l.b16 %v526
    %v662 = vunpack.c.l.b16 %v527
    %v663 = vunpack.c.l.b16 %v528
    %v664 = vunpack.c.l.b16 %v529
    %v665 = vunpack.c.l.b16 %v530
    %v666 = vunpack.c.l.b16 %v531
    %v667 = vunpack.c.l.b16 %v532
    %v668 = vunpack.c.l.b16 %v533
    %v669 = vunpack.c.l.b16 %v534
    %v670 = vunpack.c.l.b16 %v535
    %v671 = vpack.c.b16 %v656, %v655
    %v672 = vpack.c.b16 %v658, %v657
    %v673 = vpack.c.b16 %v660, %v659
    %v674 = vpack.c.b16 %v662, %v661
    %v675 = vpack.c.b16 %v664, %v663
    %v676 = vpack.c.b16 %v666, %v665
    %v677 = vpack.c.b16 %v668, %v667
    %v678 = vpack.c.b16 %v670, %v669
    %687 = vmatprep.subr.bf16.mxu0 0
    %688 = vmatpush1.bf16.msra.mxu0 %v678
    %689 = vmatprep.subr.bf16.mxu0 0
    %690 = vmatpush1.bf16.msra.mxu0 %v677
    %691 = vmatprep.subr.bf16.mxu0 0
    %692 = vmatpush1.bf16.msra.mxu0 %v676
    %693 = vmatprep.subr.bf16.mxu0 0
    %694 = vmatpush1.bf16.msra.mxu0 %v675
    %695 = vmatprep.subr.bf16.mxu0 0
    %696 = vmatpush1.bf16.msra.mxu0 %v674
    %697 = vmatprep.subr.bf16.mxu0 0
    %698 = vmatpush1.bf16.msra.mxu0 %v673
    %699 = vmatprep.subr.bf16.mxu0 0
    %700 = vmatpush1.bf16.msra.mxu0 %v672
    %701 = vmatprep.subr.bf16.mxu0 0
    %702 = vmatpush1.bf16.msra.mxu0 %v671
    %703 = vmatprep.subr.bf16.mxu0 0
    %704 = vmatpush2.bf16.msra.mxu0 0
    %705 = vmatprep.subr.bf16.mxu0 0
    %706 = vmatpush2.bf16.msra.mxu0 0
    %707 = vmatprep.subr.bf16.mxu0 0
    %708 = vmatpush2.bf16.msra.mxu0 0
    %709 = vmatprep.subr.bf16.mxu0 0
    %710 = vmatpush2.bf16.msra.mxu0 0
    %711 = vmatprep.subr.bf16.mxu0 0
    %712 = vmatpush2.bf16.msra.mxu0 0
    %713 = vmatprep.subr.bf16.mxu0 0
    %714 = vmatpush2.bf16.msra.mxu0 0
    %715 = vmatprep.subr.bf16.mxu0 0
    %716 = vmatpush2.bf16.msra.mxu0 0
    %717 = vmatprep.subr.bf16.mxu0 0
    %718 = vmatpush2.bf16.msra.mxu0 0
    %719 = vmatprep.mubr.bf16.mxu0 0
    %720 = vmatmul.mubr.bf16.gmra.mxu0 %v607
    %v721 = vpop.f32.mrf.mxu0
    %v722 = vadd.f32 %v541, %v721
    %v723 = vpop.f32.mrf.mxu0
    %v724 = vpop.f32.mrf.mxu0
    %v725 = vadd.f32 %v541, %v724
    %v726 = vpop.f32.mrf.mxu0
    %727 = vmatprep.mubr.bf16.mxu0 0
    %728 = vmatmul.mubr.bf16.gmra.mxu0 %v608
    %v729 = vpop.f32.mrf.mxu0
    %v730 = vadd.f32 %v541, %v729
    %v731 = vpop.f32.mrf.mxu0
    %v732 = vpop.f32.mrf.mxu0
    %v733 = vadd.f32 %v541, %v732
    %v734 = vpop.f32.mrf.mxu0
    %735 = vmatprep.mubr.bf16.mxu0 0
    %736 = vmatmul.mubr.bf16.gmra.mxu0 %v609
    %v737 = vpop.f32.mrf.mxu0
    %v738 = vadd.f32 %v541, %v737
    %v739 = vpop.f32.mrf.mxu0
    %v740 = vpop.f32.mrf.mxu0
    %v741 = vadd.f32 %v541, %v740
    %v742 = vpop.f32.mrf.mxu0
    %743 = vmatprep.mubr.bf16.mxu0 0
    %744 = vmatmul.mubr.bf16.gmra.mxu0 %v610
    %v745 = vpop.f32.mrf.mxu0
    %v746 = vadd.f32 %v541, %v745
    %v747 = vpop.f32.mrf.mxu0
    %v748 = vpop.f32.mrf.mxu0
    %v749 = vadd.f32 %v541, %v748
    %v750 = vpop.f32.mrf.mxu0
    %751 = vmatprep.mubr.bf16.mxu0 0
    %752 = vmatmul.mubr.bf16.gmra.mxu0 %v611
    %v753 = vpop.f32.mrf.mxu0
    %v754 = vadd.f32 %v541, %v753
    %v755 = vpop.f32.mrf.mxu0
    %v756 = vpop.f32.mrf.mxu0
    %v757 = vadd.f32 %v541, %v756
    %v758 = vpop.f32.mrf.mxu0
    %759 = vmatprep.mubr.bf16.mxu0 0
    %760 = vmatmul.mubr.bf16.gmra.mxu0 %v612
    %v761 = vpop.f32.mrf.mxu0
    %v762 = vadd.f32 %v541, %v761
    %v763 = vpop.f32.mrf.mxu0
    %v764 = vpop.f32.mrf.mxu0
    %v765 = vadd.f32 %v541, %v764
    %v766 = vpop.f32.mrf.mxu0
    %767 = vmatprep.mubr.bf16.mxu0 0
    %768 = vmatmul.mubr.bf16.gmra.mxu0 %v613
    %v769 = vpop.f32.mrf.mxu0
    %v770 = vadd.f32 %v541, %v769
    %v771 = vpop.f32.mrf.mxu0
    %v772 = vpop.f32.mrf.mxu0
    %v773 = vadd.f32 %v541, %v772
    %v774 = vpop.f32.mrf.mxu0
    %775 = vmatprep.mubr.bf16.mxu0 0
    %776 = vmatmul.mubr.bf16.gmra.mxu0 %v614
    %v777 = vpop.f32.mrf.mxu0
    %v778 = vadd.f32 %v541, %v777
    %v779 = vpop.f32.mrf.mxu0
    %v780 = vpop.f32.mrf.mxu0
    %v781 = vadd.f32 %v541, %v780
    %v782 = vpop.f32.mrf.mxu0
    %783 = vmatprep.mubr.bf16.mxu0 0
    %784 = vmatmul.mubr.bf16.gmra.mxu0 %v615
    %v785 = vpop.f32.mrf.mxu0
    %v786 = vadd.f32 %v541, %v785
    %v787 = vpop.f32.mrf.mxu0
    %v788 = vpop.f32.mrf.mxu0
    %v789 = vadd.f32 %v541, %v788
    %v790 = vpop.f32.mrf.mxu0
    %791 = vmatprep.mubr.bf16.mxu0 0
    %792 = vmatmul.mubr.bf16.gmra.mxu0 %v616
    %v793 = vpop.f32.mrf.mxu0
    %v794 = vadd.f32 %v541, %v793
    %v795 = vpop.f32.mrf.mxu0
    %v796 = vpop.f32.mrf.mxu0
    %v797 = vadd.f32 %v541, %v796
    %v798 = vpop.f32.mrf.mxu0
    %799 = vmatprep.mubr.bf16.mxu0 0
    %800 = vmatmul.mubr.bf16.gmra.mxu0 %v617
    %v801 = vpop.f32.mrf.mxu0
    %v802 = vadd.f32 %v541, %v801
    %v803 = vpop.f32.mrf.mxu0
    %v804 = vpop.f32.mrf.mxu0
    %v805 = vadd.f32 %v541, %v804
    %v806 = vpop.f32.mrf.mxu0
    %807 = vmatprep.mubr.bf16.mxu0 0
    %808 = vmatmul.mubr.bf16.gmra.mxu0 %v618
    %v809 = vpop.f32.mrf.mxu0
    %v810 = vadd.f32 %v541, %v809
    %v811 = vpop.f32.mrf.mxu0
    %v812 = vpop.f32.mrf.mxu0
    %v813 = vadd.f32 %v541, %v812
    %v814 = vpop.f32.mrf.mxu0
    %815 = vmatprep.mubr.bf16.mxu0 0
    %816 = vmatmul.mubr.bf16.gmra.mxu0 %v619
    %v817 = vpop.f32.mrf.mxu0
    %v818 = vadd.f32 %v541, %v817
    %v819 = vpop.f32.mrf.mxu0
    %v820 = vpop.f32.mrf.mxu0
    %v821 = vadd.f32 %v541, %v820
    %v822 = vpop.f32.mrf.mxu0
    %823 = vmatprep.mubr.bf16.mxu0 0
    %824 = vmatmul.mubr.bf16.gmra.mxu0 %v620
    %v825 = vpop.f32.mrf.mxu0
    %v826 = vadd.f32 %v541, %v825
    %v827 = vpop.f32.mrf.mxu0
    %v828 = vpop.f32.mrf.mxu0
    %v829 = vadd.f32 %v541, %v828
    %v830 = vpop.f32.mrf.mxu0
    %831 = vmatprep.mubr.bf16.mxu0 0
    %832 = vmatmul.mubr.bf16.gmra.mxu0 %v621
    %v833 = vpop.f32.mrf.mxu0
    %v834 = vadd.f32 %v541, %v833
    %v835 = vpop.f32.mrf.mxu0
    %v836 = vpop.f32.mrf.mxu0
    %v837 = vadd.f32 %v541, %v836
    %v838 = vpop.f32.mrf.mxu0
    %839 = vmatprep.mubr.bf16.mxu0 0
    %840 = vmatmul.mubr.bf16.gmra.mxu0 %v622
    %v841 = vpop.f32.mrf.mxu0
    %v842 = vadd.f32 %v541, %v841
    %v843 = vpop.f32.mrf.mxu0
    %v844 = vpop.f32.mrf.mxu0
    %v845 = vadd.f32 %v541, %v844
    %v846 = vpop.f32.mrf.mxu0
    %847 = vdwg.mxu0
    %v848 = vpack.c.bf16 %v725, %v722
    %v849 = vpack.c.bf16 %v733, %v730
    %v850 = vpack.c.bf16 %v741, %v738
    %v851 = vpack.c.bf16 %v749, %v746
    %v852 = vpack.c.bf16 %v757, %v754
    %v853 = vpack.c.bf16 %v765, %v762
    %v854 = vpack.c.bf16 %v773, %v770
    %v855 = vpack.c.bf16 %v781, %v778
    %v856 = vpack.c.bf16 %v789, %v786
    %v857 = vpack.c.bf16 %v797, %v794
    %v858 = vpack.c.bf16 %v805, %v802
    %v859 = vpack.c.bf16 %v813, %v810
    %v860 = vpack.c.bf16 %v821, %v818
    %v861 = vpack.c.bf16 %v829, %v826
    %v862 = vpack.c.bf16 %v837, %v834
    %v863 = vpack.c.bf16 %v845, %v842
    %v880 = vunpack.c.l.b16 %v848
    %v881 = vunpack.c.h.b16 %v848
    %v882 = vunpack.c.l.b16 %v849
    %v883 = vunpack.c.h.b16 %v849
    %v884 = vunpack.c.l.b16 %v850
    %v885 = vunpack.c.h.b16 %v850
    %v886 = vunpack.c.l.b16 %v851
    %v887 = vunpack.c.h.b16 %v851
    %v888 = vunpack.c.l.b16 %v852
    %v889 = vunpack.c.h.b16 %v852
    %v890 = vunpack.c.l.b16 %v853
    %v891 = vunpack.c.h.b16 %v853
    %v892 = vunpack.c.l.b16 %v854
    %v893 = vunpack.c.h.b16 %v854
    %v894 = vunpack.c.l.b16 %v855
    %v895 = vunpack.c.h.b16 %v855
    %v896 = vunpack.c.l.b16 %v856
    %v897 = vunpack.c.h.b16 %v856
    %v898 = vunpack.c.l.b16 %v857
    %v899 = vunpack.c.h.b16 %v857
    %v900 = vunpack.c.l.b16 %v858
    %v901 = vunpack.c.h.b16 %v858
    %v902 = vunpack.c.l.b16 %v859
    %v903 = vunpack.c.h.b16 %v859
    %v904 = vunpack.c.l.b16 %v860
    %v905 = vunpack.c.h.b16 %v860
    %v906 = vunpack.c.l.b16 %v861
    %v907 = vunpack.c.h.b16 %v861
    %v908 = vunpack.c.l.b16 %v862
    %v909 = vunpack.c.h.b16 %v862
    %v910 = vunpack.c.l.b16 %v863
    %v911 = vunpack.c.h.b16 %v863
    %v912 = vpack.c.b16 %v880, %v880
    %v913 = vpack.c.b16 %v881, %v881
    %v914 = vpack.c.b16 %v882, %v882
    %v915 = vpack.c.b16 %v883, %v883
    %v916 = vpack.c.b16 %v884, %v884
    %v917 = vpack.c.b16 %v885, %v885
    %v918 = vpack.c.b16 %v886, %v886
    %v919 = vpack.c.b16 %v887, %v887
    %v920 = vpack.c.b16 %v888, %v888
    %v921 = vpack.c.b16 %v889, %v889
    %v922 = vpack.c.b16 %v890, %v890
    %v923 = vpack.c.b16 %v891, %v891
    %v924 = vpack.c.b16 %v892, %v892
    %v925 = vpack.c.b16 %v893, %v893
    %v926 = vpack.c.b16 %v894, %v894
    %v927 = vpack.c.b16 %v895, %v895
    %v928 = vpack.c.b16 %v896, %v896
    %v929 = vpack.c.b16 %v897, %v897
    %v930 = vpack.c.b16 %v898, %v898
    %v931 = vpack.c.b16 %v899, %v899
    %v932 = vpack.c.b16 %v900, %v900
    %v933 = vpack.c.b16 %v901, %v901
    %v934 = vpack.c.b16 %v902, %v902
    %v935 = vpack.c.b16 %v903, %v903
    %v936 = vpack.c.b16 %v904, %v904
    %v937 = vpack.c.b16 %v905, %v905
    %v938 = vpack.c.b16 %v906, %v906
    %v939 = vpack.c.b16 %v907, %v907
    %v940 = vpack.c.b16 %v908, %v908
    %v941 = vpack.c.b16 %v909, %v909
    %v942 = vpack.c.b16 %v910, %v910
    %v943 = vpack.c.b16 %v911, %v911
    %976 = vst [vmem:[%s5] sm:$0xf] %v912
    %977 = vst [vmem:[%s5 + $0x4] sm:$0xf] %v913
    %978 = vst [vmem:[%s5 + $0x8] sm:$0xf] %v914
    %979 = vst [vmem:[%s5 + $0xc] sm:$0xf] %v915
    %980 = vst [vmem:[%s5 + $0x10] sm:$0xf] %v916
    %981 = vst [vmem:[%s5 + $0x14] sm:$0xf] %v917
    %982 = vst [vmem:[%s5 + $0x18] sm:$0xf] %v918
    %983 = vst [vmem:[%s5 + $0x1c] sm:$0xf] %v919
    %984 = vst [vmem:[%s5 + $0x20] sm:$0xf] %v920
    %985 = vst [vmem:[%s5 + $0x24] sm:$0xf] %v921
    %986 = vst [vmem:[%s5 + $0x28] sm:$0xf] %v922
    %987 = vst [vmem:[%s5 + $0x2c] sm:$0xf] %v923
    %988 = vst [vmem:[%s5 + $0x30] sm:$0xf] %v924
    %989 = vst [vmem:[%s5 + $0x34] sm:$0xf] %v925
    %990 = vst [vmem:[%s5 + $0x38] sm:$0xf] %v926
    %991 = vst [vmem:[%s5 + $0x3c] sm:$0xf] %v927
    %992 = vst [vmem:[%s5 + $0x40] sm:$0xf] %v928
    %993 = vst [vmem:[%s5 + $0x44] sm:$0xf] %v929
    %994 = vst [vmem:[%s5 + $0x48] sm:$0xf] %v930
    %995 = vst [vmem:[%s5 + $0x4c] sm:$0xf] %v931
    %996 = vst [vmem:[%s5 + $0x50] sm:$0xf] %v932
    %997 = vst [vmem:[%s5 + $0x54] sm:$0xf] %v933
    %998 = vst [vmem:[%s5 + $0x58] sm:$0xf] %v934
    %999 = vst [vmem:[%s5 + $0x5c] sm:$0xf] %v935
    %1000 = vst [vmem:[%s5 + $0x60] sm:$0xf] %v936
    %1001 = vst [vmem:[%s5 + $0x64] sm:$0xf] %v937
    %1002 = vst [vmem:[%s5 + $0x68] sm:$0xf] %v938
    %1003 = vst [vmem:[%s5 + $0x6c] sm:$0xf] %v939
    %1004 = vst [vmem:[%s5 + $0x70] sm:$0xf] %v940
    %1005 = vst [vmem:[%s5 + $0x74] sm:$0xf] %v941
    %1006 = vst [vmem:[%s5 + $0x78] sm:$0xf] %v942
    %1007 = vst [vmem:[%s5 + $0x7c] sm:$0xf] %v943
    // Predicated region
    $region14: #{patch_embedding.2} parent=1 // pred_check
      _
    $region15: #{patch_embedding.2} parent=1 // pred_check_branch
      %1009 = sbr.rel (0) target = $region17
    $region16: #{patch_embedding.2} parent=1 // pred_region
      _
    $region17: #{patch_embedding.2} parent=1 // pred_fallthru
      _
    // Predicated region
    $region18: #{patch_embedding.2} parent=1 // pred_check
      _
    $region19: #{patch_embedding.2} parent=1 // pred_check_branch
      %1011 = sbr.rel (0) target = $region21
    $region20: #{patch_embedding.2} parent=1 // pred_region
      _
    $region21: #{patch_embedding.2} parent=1 // pred_fallthru
      _

</llo_original>
